<compile_context>
chip_gen: v6e
topology: v6e:2x2x1
jax: 0.10.0
libtpu: 0.0.40
codegen_flags: <defaults>
</compile_context>

<pallas_src>
import jax
import jax.numpy as jnp
from jax import lax
from jax.experimental import pallas as pl
from jax.experimental.pallas import tpu as pltpu

_NEG_INF = float("-inf")
_LN_EPS = 1e-5  # torch.nn.LayerNorm default


def _layernorm_no_affine(v):
    mu = jnp.mean(v, axis=-1, keepdims=True)
    c = v - mu
    var = jnp.mean(c * c, axis=-1, keepdims=True)  # biased variance (torch)
    return c * lax.rsqrt(var + _LN_EPS)


def no_affine_pooler_kernel(x_ref, valid_ref, out_ref,
                            sum_ref, cnt_ref, max_ref, start_ref):
    l = pl.program_id(1)
    F = sum_ref.shape[-1]

    @pl.when(l == 0)
    def _init():
        sum_ref[...] = jnp.zeros_like(sum_ref)
        cnt_ref[...] = jnp.zeros_like(cnt_ref)
        max_ref[...] = jnp.full_like(max_ref, _NEG_INF)
        start_ref[...] = x_ref[0]                      # input[0] for this batch tile

    x = x_ref[...]                                     # (tl, tb, F)
    valid = valid_ref[...]                             # (tl, tb, 1): 1.0 keep, 0.0 pad

    sum_ref[...] += jnp.sum(x * valid, axis=0)         # (tb, F)
    cnt_ref[...] += jnp.sum(valid, axis=0)             # (tb, 1)
    masked = jnp.where(valid > 0.0, x, _NEG_INF)       # pad rows -> -inf (torch: +log(valid))
    max_ref[...] = jnp.maximum(max_ref[...], jnp.max(masked, axis=0))

    @pl.when(l == pl.num_programs(1) - 1)
    def _finalize():
        mean = sum_ref[...] / cnt_ref[...]             # runs once; exact divide
        out_ref[:, 0:F] = _layernorm_no_affine(mean).astype(out_ref.dtype)
        out_ref[:, F:2 * F] = _layernorm_no_affine(start_ref[...]).astype(out_ref.dtype)
        out_ref[:, 2 * F:3 * F] = _layernorm_no_affine(max_ref[...]).astype(out_ref.dtype)


def no_affine_pooler(x, padding_mask, *, x_block_bytes=4 << 20):
    """x: [L, B, F] float32, padding_mask: [L, B] bool (True = pad) -> [B, 3F]."""
    L, B, F = x.shape

    # validity mask as f32 [L, B, 1]: lane-broadcast layout matching x.
    # (small: F-times less HBM traffic than x itself)
    valid = jnp.logical_not(padding_mask).astype(jnp.float32)[:, :, None]

    # batch tile: sublane-dense when possible (also gives v7x megacore a parallel axis)
    tb = 8 if (B % 8 == 0) else B

    # length tile: largest multiple of 8 whose x block is ~x_block_bytes
    tl = max(8, (x_block_bytes // (tb * F * 4)) // 8 * 8)
    tl = min(tl, ((L + 7) // 8) * 8)

    # pad L to a multiple of tl; padded rows are "pad" in the mask (valid = 0)
    Lp = pl.cdiv(L, tl) * tl
    if Lp != L:
        x = jnp.pad(x, ((0, Lp - L), (0, 0), (0, 0)))
        valid = jnp.pad(valid, ((0, Lp - L), (0, 0), (0, 0)))

    grid = (B // tb, Lp // tl)

    return pl.pallas_call(
        no_affine_pooler_kernel,
        out_shape=jax.ShapeDtypeStruct((B, 3 * F), x.dtype),
        grid_spec=pltpu.PrefetchScalarGridSpec(
            num_scalar_prefetch=0,
            grid=grid,
            in_specs=[
                pl.BlockSpec((tl, tb, F), lambda b, l: (l, b, 0)),
                pl.BlockSpec((tl, tb, 1), lambda b, l: (l, b, 0)),
            ],
            out_specs=pl.BlockSpec((tb, 3 * F), lambda b, l: (b, 0)),
            scratch_shapes=[
                pltpu.VMEM((tb, F), jnp.float32),   # masked sum
                pltpu.VMEM((tb, 1), jnp.float32),   # valid count
                pltpu.VMEM((tb, F), jnp.float32),   # running max
                pltpu.VMEM((tb, F), jnp.float32),   # input[0]
            ],
        ),
        compiler_params=pltpu.CompilerParams(
            dimension_semantics=("parallel", "arbitrary"),
            vmem_limit_bytes=32 * 1024 * 1024,
        ),
    )(x, valid)


if __name__ == "__main__":
    L, B, F = 16, 8, 128
    key = jax.random.PRNGKey(0)
    kx, km = jax.random.split(key)

    x = jax.random.normal(kx, (L, B, F), dtype=jnp.float32)
    padding_mask = jax.random.bernoulli(km, p=0.3, shape=(L, B))
    # guarantee at least one valid position per batch element (as torch semantics
    # would otherwise produce NaN from 0/0 and max over all -inf)
    padding_mask = padding_mask.at[0].set(False)

    out = jax.block_until_ready(no_affine_pooler(x, padding_mask))

    # plain-JAX reference of the torch forward
    valid_f = (~padding_mask).astype(jnp.float32)
    mean = jnp.sum(x * valid_f[:, :, None], axis=0) / jnp.sum(valid_f, axis=0)[:, None]
    start = x[0]
    maxp = jnp.max(x + jnp.log(valid_f)[:, :, None], axis=0)

    def ln_ref(v):
        mu = v.mean(-1, keepdims=True)
        c = v - mu
        var = (c * c).mean(-1, keepdims=True)
        return c / jnp.sqrt(var + _LN_EPS)

    ref = jnp.concatenate([ln_ref(mean), ln_ref(start), ln_ref(maxp)], axis=-1)

    assert out.shape == (B, 3 * F)
    assert jnp.allclose(out, ref, atol=1e-4, rtol=1e-4)

    print("KERNEL_OK")
</pallas_src>

<mosaic_0001>
module attributes {stable_mosaic.version = 11 : i64} {
  func.func @no_affine_pooler_kernel(%arg0: i32, %arg1: i32, %arg2: memref<16x8x128xf32, #tpu.memory_space<vmem>>, %arg3: memref<16x8x1xf32, #tpu.memory_space<vmem>>, %arg4: memref<8x384xf32, #tpu.memory_space<vmem>>, %arg5: memref<8x128xf32, #tpu.memory_space<vmem>>, %arg6: memref<8x1xf32, #tpu.memory_space<vmem>>, %arg7: memref<8x128xf32, #tpu.memory_space<vmem>>, %arg8: memref<8x128xf32, #tpu.memory_space<vmem>>) attributes {dimension_semantics = [#tpu.dimension_semantics<parallel>, #tpu.dimension_semantics<arbitrary>], iteration_bounds = array<i64: 1, 1>, scalar_prefetch = 0 : i64, scratch_operands = 4 : i64, tpu.core_type = #tpu.core_type<tc>, window_params = [{transform_indices = @transform_0, window_bounds = array<i64: 16, 8, 128>}, {transform_indices = @transform_1, window_bounds = array<i64: 16, 8, 1>}, {transform_indices = @transform_2, window_bounds = array<i64: 8, 384>}]} {
    %c0_i32 = arith.constant 0 : i32
    %0 = arith.cmpi eq, %arg1, %c0_i32 : i32
    %1 = arith.extui %0 : i1 to i32
    %c0_i32_0 = arith.constant 0 : i32
    %2 = arith.cmpi ne, %1, %c0_i32_0 : i32
    scf.if %2 {
      %cst_24 = arith.constant 0.000000e+00 : f32
      %28 = vector.broadcast %cst_24 : f32 to vector<8x128xf32>
      %c0_25 = arith.constant 0 : index
      %c0_26 = arith.constant 0 : index
      %29 = vector.load %arg5[%c0_25, %c0_26] : memref<8x128xf32, #tpu.memory_space<vmem>>, vector<8x128xf32>
      tpu.vector_store %arg5[%c0_25, %c0_26], %28 {strides = array<i32>} : memref<8x128xf32, #tpu.memory_space<vmem>>, vector<8x128xf32>,
      %cst_27 = arith.constant 0.000000e+00 : f32
      %30 = vector.broadcast %cst_27 : f32 to vector<8x1xf32>
      %c0_28 = arith.constant 0 : index
      %c0_29 = arith.constant 0 : index
      %31 = vector.load %arg6[%c0_28, %c0_29] : memref<8x1xf32, #tpu.memory_space<vmem>>, vector<8x1xf32>
      tpu.vector_store %arg6[%c0_28, %c0_29], %30 {strides = array<i32>} : memref<8x1xf32, #tpu.memory_space<vmem>>, vector<8x1xf32>,
      %cst_30 = arith.constant 0xFF800000 : f32
      %32 = vector.broadcast %cst_30 : f32 to vector<8x128xf32>
      %c0_31 = arith.constant 0 : index
      %c0_32 = arith.constant 0 : index
      %33 = vector.load %arg7[%c0_31, %c0_32] : memref<8x128xf32, #tpu.memory_space<vmem>>, vector<8x128xf32>
      tpu.vector_store %arg7[%c0_31, %c0_32], %32 {strides = array<i32>} : memref<8x128xf32, #tpu.memory_space<vmem>>, vector<8x128xf32>,
      %c0_33 = arith.constant 0 : index
      %c0_34 = arith.constant 0 : index
      %c0_35 = arith.constant 0 : index
      %34 = vector.load %arg2[%c0_33, %c0_34, %c0_35] : memref<16x8x128xf32, #tpu.memory_space<vmem>>, vector<1x8x128xf32>
      %35 = vector.shape_cast %34 : vector<1x8x128xf32> to vector<8x128xf32>
      %c0_36 = arith.constant 0 : index
      %c0_37 = arith.constant 0 : index
      %36 = vector.load %arg8[%c0_36, %c0_37] : memref<8x128xf32, #tpu.memory_space<vmem>>, vector<8x128xf32>
      tpu.vector_store %arg8[%c0_36, %c0_37], %35 {strides = array<i32>} : memref<8x128xf32, #tpu.memory_space<vmem>>, vector<8x128xf32>,
    } else {
    }
    %c0 = arith.constant 0 : index
    %c0_1 = arith.constant 0 : index
    %c0_2 = arith.constant 0 : index
    %3 = vector.load %arg2[%c0, %c0_1, %c0_2] : memref<16x8x128xf32, #tpu.memory_space<vmem>>, vector<16x8x128xf32>
    %c0_3 = arith.constant 0 : index
    %c0_4 = arith.constant 0 : index
    %c0_5 = arith.constant 0 : index
    %4 = vector.load %arg3[%c0_3, %c0_4, %c0_5] : memref<16x8x1xf32, #tpu.memory_space<vmem>>, vector<16x8x1xf32>
    %c0_6 = arith.constant 0 : index
    %c0_7 = arith.constant 0 : index
    %5 = vector.load %arg5[%c0_6, %c0_7] : memref<8x128xf32, #tpu.memory_space<vmem>>, vector<8x128xf32>
    %6 = vector.broadcast %4 : vector<16x8x1xf32> to vector<16x8x128xf32>
    %7 = arith.mulf %3, %6 : vector<16x8x128xf32>
    %cst = arith.constant dense<0.000000e+00> : vector<8x128xf32>
    %8 = vector.multi_reduction <add>, %7, %cst [0] : vector<16x8x128xf32> to vector<8x128xf32>
    %9 = arith.addf %5, %8 : vector<8x128xf32>
    %c0_8 = arith.constant 0 : index
    %c0_9 = arith.constant 0 : index
    %10 = vector.load %arg5[%c0_8, %c0_9] : memref<8x128xf32, #tpu.memory_space<vmem>>, vector<8x128xf32>
    tpu.vector_store %arg5[%c0_8, %c0_9], %9 {strides = array<i32>} : memref<8x128xf32, #tpu.memory_space<vmem>>, vector<8x128xf32>,
    %c0_10 = arith.constant 0 : index
    %c0_11 = arith.constant 0 : index
    %11 = vector.load %arg6[%c0_10, %c0_11] : memref<8x1xf32, #tpu.memory_space<vmem>>, vector<8x1xf32>
    %cst_12 = arith.constant dense<0.000000e+00> : vector<8x1xf32>
    %12 = vector.multi_reduction <add>, %4, %cst_12 [0] : vector<16x8x1xf32> to vector<8x1xf32>
    %13 = arith.addf %11, %12 : vector<8x1xf32>
    %c0_13 = arith.constant 0 : index
    %c0_14 = arith.constant 0 : index
    %14 = vector.load %arg6[%c0_13, %c0_14] : memref<8x1xf32, #tpu.memory_space<vmem>>, vector<8x1xf32>
    tpu.vector_store %arg6[%c0_13, %c0_14], %13 {strides = array<i32>} : memref<8x1xf32, #tpu.memory_space<vmem>>, vector<8x1xf32>,
    %cst_15 = arith.constant 0.000000e+00 : f32
    %15 = vector.broadcast %cst_15 : f32 to vector<16x8x1xf32>
    %16 = arith.cmpf ogt, %4, %15 : vector<16x8x1xf32>
    %cst_16 = arith.constant 0xFF800000 : f32
    %17 = vector.shape_cast %16 : vector<16x8x1xi1> to vector<16x8x1xi1>
    %18 = vector.broadcast %17 : vector<16x8x1xi1> to vector<16x8x128xi1>
    %19 = vector.broadcast %cst_16 : f32 to vector<16x8x128xf32>
    %20 = arith.select %18, %3, %19 : vector<16x8x128xi1>, vector<16x8x128xf32>
    %c0_17 = arith.constant 0 : index
    %c0_18 = arith.constant 0 : index
    %21 = vector.load %arg7[%c0_17, %c0_18] : memref<8x128xf32, #tpu.memory_space<vmem>>, vector<8x128xf32>
    %cst_19 = arith.constant dense<0xFF800000> : vector<8x128xf32>
    %22 = vector.multi_reduction <maximumf>, %20, %cst_19 [0] : vector<16x8x128xf32> to vector<8x128xf32>
    %23 = arith.maximumf %21, %22 : vector<8x128xf32>
    %c0_20 = arith.constant 0 : index
    %c0_21 = arith.constant 0 : index
    %24 = vector.load %arg7[%c0_20, %c0_21] : memref<8x128xf32, #tpu.memory_space<vmem>>, vector<8x128xf32>
    tpu.vector_store %arg7[%c0_20, %c0_21], %23 {strides = array<i32>} : memref<8x128xf32, #tpu.memory_space<vmem>>, vector<8x128xf32>,
    %c0_i32_22 = arith.constant 0 : i32
    %25 = arith.cmpi eq, %arg1, %c0_i32_22 : i32
    %26 = arith.extui %25 : i1 to i32
    %c0_i32_23 = arith.constant 0 : i32
    %27 = arith.cmpi ne, %26, %c0_i32_23 : i32
    scf.if %27 {
      %c0_24 = arith.constant 0 : index
      %c0_25 = arith.constant 0 : index
      %28 = vector.load %arg5[%c0_24, %c0_25] : memref<8x128xf32, #tpu.memory_space<vmem>>, vector<8x128xf32>
      %c0_26 = arith.constant 0 : index
      %c0_27 = arith.constant 0 : index
      %29 = vector.load %arg6[%c0_26, %c0_27] : memref<8x1xf32, #tpu.memory_space<vmem>>, vector<8x1xf32>
      %30 = vector.broadcast %29 : vector<8x1xf32> to vector<8x128xf32>
      %31 = arith.divf %28, %30 : vector<8x128xf32>
      %cst_28 = arith.constant dense<0.000000e+00> : vector<8xf32>
      %32 = vector.multi_reduction <add>, %31, %cst_28 [1] : vector<8x128xf32> to vector<8xf32>
      %33 = vector.shape_cast %32 : vector<8xf32> to vector<8x1xf32>
      %cst_29 = arith.constant 1.280000e+02 : f32
      %34 = vector.broadcast %cst_29 : f32 to vector<8x1xf32>
      %35 = arith.divf %33, %34 : vector<8x1xf32>
      %36 = vector.broadcast %35 : vector<8x1xf32> to vector<8x128xf32>
      %37 = arith.subf %31, %36 : vector<8x128xf32>
      %38 = arith.mulf %37, %37 : vector<8x128xf32>
      %cst_30 = arith.constant dense<0.000000e+00> : vector<8xf32>
      %39 = vector.multi_reduction <add>, %38, %cst_30 [1] : vector<8x128xf32> to vector<8xf32>
      %40 = vector.shape_cast %39 : vector<8xf32> to vector<8x1xf32>
      %cst_31 = arith.constant 1.280000e+02 : f32
      %41 = vector.broadcast %cst_31 : f32 to vector<8x1xf32>
      %42 = arith.divf %40, %41 : vector<8x1xf32>
      %cst_32 = arith.constant 9.99999974E-6 : f32
      %43 = vector.broadcast %cst_32 : f32 to vector<8x1xf32>
      %44 = arith.addf %42, %43 : vector<8x1xf32>
      %45 = math.rsqrt %44 : vector<8x1xf32>
      %46 = vector.broadcast %45 : vector<8x1xf32> to vector<8x128xf32>
      %47 = arith.mulf %37, %46 : vector<8x128xf32>
      %c0_33 = arith.constant 0 : index
      %c0_34 = arith.constant 0 : index
      %48 = vector.load %arg4[%c0_33, %c0_34] : memref<8x384xf32, #tpu.memory_space<vmem>>, vector<8x128xf32>
      tpu.vector_store %arg4[%c0_33, %c0_34], %47 {strides = array<i32>} : memref<8x384xf32, #tpu.memory_space<vmem>>, vector<8x128xf32>,
      %c0_35 = arith.constant 0 : index
      %c0_36 = arith.constant 0 : index
      %49 = vector.load %arg8[%c0_35, %c0_36] : memref<8x128xf32, #tpu.memory_space<vmem>>, vector<8x128xf32>
      %cst_37 = arith.constant dense<0.000000e+00> : vector<8xf32>
      %50 = vector.multi_reduction <add>, %49, %cst_37 [1] : vector<8x128xf32> to vector<8xf32>
      %51 = vector.shape_cast %50 : vector<8xf32> to vector<8x1xf32>
      %cst_38 = arith.constant 1.280000e+02 : f32
      %52 = vector.broadcast %cst_38 : f32 to vector<8x1xf32>
      %53 = arith.divf %51, %52 : vector<8x1xf32>
      %54 = vector.broadcast %53 : vector<8x1xf32> to vector<8x128xf32>
      %55 = arith.subf %49, %54 : vector<8x128xf32>
      %56 = arith.mulf %55, %55 : vector<8x128xf32>
      %cst_39 = arith.constant dense<0.000000e+00> : vector<8xf32>
      %57 = vector.multi_reduction <add>, %56, %cst_39 [1] : vector<8x128xf32> to vector<8xf32>
      %58 = vector.shape_cast %57 : vector<8xf32> to vector<8x1xf32>
      %cst_40 = arith.constant 1.280000e+02 : f32
      %59 = vector.broadcast %cst_40 : f32 to vector<8x1xf32>
      %60 = arith.divf %58, %59 : vector<8x1xf32>
      %cst_41 = arith.constant 9.99999974E-6 : f32
      %61 = vector.broadcast %cst_41 : f32 to vector<8x1xf32>
      %62 = arith.addf %60, %61 : vector<8x1xf32>
      %63 = math.rsqrt %62 : vector<8x1xf32>
      %64 = vector.broadcast %63 : vector<8x1xf32> to vector<8x128xf32>
      %65 = arith.mulf %55, %64 : vector<8x128xf32>
      %c0_42 = arith.constant 0 : index
      %c128 = arith.constant 128 : index
      %66 = vector.load %arg4[%c0_42, %c128] : memref<8x384xf32, #tpu.memory_space<vmem>>, vector<8x128xf32>
      tpu.vector_store %arg4[%c0_42, %c128], %65 {strides = array<i32>} : memref<8x384xf32, #tpu.memory_space<vmem>>, vector<8x128xf32>,
      %c0_43 = arith.constant 0 : index
      %c0_44 = arith.constant 0 : index
      %67 = vector.load %arg7[%c0_43, %c0_44] : memref<8x128xf32, #tpu.memory_space<vmem>>, vector<8x128xf32>
      %cst_45 = arith.constant dense<0.000000e+00> : vector<8xf32>
      %68 = vector.multi_reduction <add>, %67, %cst_45 [1] : vector<8x128xf32> to vector<8xf32>
      %69 = vector.shape_cast %68 : vector<8xf32> to vector<8x1xf32>
      %cst_46 = arith.constant 1.280000e+02 : f32
      %70 = vector.broadcast %cst_46 : f32 to vector<8x1xf32>
      %71 = arith.divf %69, %70 : vector<8x1xf32>
      %72 = vector.broadcast %71 : vector<8x1xf32> to vector<8x128xf32>
      %73 = arith.subf %67, %72 : vector<8x128xf32>
      %74 = arith.mulf %73, %73 : vector<8x128xf32>
      %cst_47 = arith.constant dense<0.000000e+00> : vector<8xf32>
      %75 = vector.multi_reduction <add>, %74, %cst_47 [1] : vector<8x128xf32> to vector<8xf32>
      %76 = vector.shape_cast %75 : vector<8xf32> to vector<8x1xf32>
      %cst_48 = arith.constant 1.280000e+02 : f32
      %77 = vector.broadcast %cst_48 : f32 to vector<8x1xf32>
      %78 = arith.divf %76, %77 : vector<8x1xf32>
      %cst_49 = arith.constant 9.99999974E-6 : f32
      %79 = vector.broadcast %cst_49 : f32 to vector<8x1xf32>
      %80 = arith.addf %78, %79 : vector<8x1xf32>
      %81 = math.rsqrt %80 : vector<8x1xf32>
      %82 = vector.broadcast %81 : vector<8x1xf32> to vector<8x128xf32>
      %83 = arith.mulf %73, %82 : vector<8x128xf32>
      %c0_50 = arith.constant 0 : index
      %c256 = arith.constant 256 : index
      %84 = vector.load %arg4[%c0_50, %c256] : memref<8x384xf32, #tpu.memory_space<vmem>>, vector<8x128xf32>
      tpu.vector_store %arg4[%c0_50, %c256], %83 {strides = array<i32>} : memref<8x384xf32, #tpu.memory_space<vmem>>, vector<8x128xf32>,
    } else {
    }
    return
  }
  func.func @transform_0(%arg0: i32, %arg1: i32) -> (i32, i32, i32) {
    %c0_i32 = arith.constant 0 : i32
    %c0_i32_0 = arith.constant 0 : i32
    return %arg1, %arg0, %c0_i32 : i32, i32, i32
  }
  func.func @transform_1(%arg0: i32, %arg1: i32) -> (i32, i32, i32) {
    %c0_i32 = arith.constant 0 : i32
    %c0_i32_0 = arith.constant 0 : i32
    return %arg1, %arg0, %c0_i32 : i32, i32, i32
  }
  func.func @transform_2(%arg0: i32, %arg1: i32) -> (i32, i32) {
    %c0_i32 = arith.constant 0 : i32
    %c0_i32_0 = arith.constant 0 : i32
    return %arg0, %c0_i32 : i32, i32
  }
}

</mosaic_0001>

<llo_original>
// kernel: tpu_custom_call.1
$region0: #{tpu_custom_call.1}
  #allocation0 [shape = 'u32[]', space=smem, size = 0x4, offset = 0x4, fixed_abs, tag = 'smem constant byte address 0x4 - core index']
  #allocation1 [shape = 'u32[144,128]{1,0:T(1,128)}', space=vmem, size = 0x12000, scoped, tag = 'internal scratch']
  #allocation2 [shape = 'f32[8,128]{1,0:T(8,128)}', space=vmem, size = 0x1000, scoped, tag = 'scratch operand']
  #allocation3 [shape = 'f32[8,1]{1,0:T(8,128)}', space=vmem, size = 0x1000, scoped, tag = 'scratch operand']
  #allocation4 [shape = 'f32[8,128]{1,0:T(8,128)}', space=vmem, size = 0x1000, scoped, tag = 'scratch operand']
  #allocation5 [shape = 'f32[8,128]{1,0:T(8,128)}', space=vmem, size = 0x1000, scoped, tag = 'scratch operand']
  %s0 = inlined_call_operand.vmem [shape: f32[16,8,128], index: 0, kind: input, shape index: {}]
  %s1 = inlined_call_operand.vmem [shape: f32[16,8,1], index: 1, kind: input, shape index: {}]
  %s2 = inlined_call_operand.hbm [shape: f32[8,384], index: 2, kind: output, shape index: {}]
  %s3 = sld [smem:[#allocation0]]
  $region26: #{tpu_custom_call.1} parent=0
    _
  %s5 = ssub.s32 1, %s3
  %s6 = scalar_select 0, %s5, %s3
  $region1: #{tpu_custom_call.1} parent=0
    #allocation6 [shape = 'u8[12288]{0}', space=vmem, size = 0x3000, scoped, tag = 'output window, operand 0, single buffered']
    #allocation7 [shape = 's32[1]{0}', space=sflag, size = 0x4, scoped, tag = 'scoped memory for tpu_custom_call.1']
    %7 = vsyncpa [#allocation7], 0
    // Predicated region
    $region2: #{tpu_custom_call.1} parent=1 // pred_check
      _
    $region3: #{tpu_custom_call.1} parent=1 // pred_check_branch
      %9 = sbr.rel (0) target = $region5
    $region4: #{tpu_custom_call.1} parent=1 // pred_region
      _
    $region5: #{tpu_custom_call.1} parent=1 // pred_fallthru
      _
    // Predicated region
    $region6: #{tpu_custom_call.1} parent=1 // pred_check
      _
    $region7: #{tpu_custom_call.1} parent=1 // pred_check_branch
      %11 = sbr.rel (0) target = $region9
    $region8: #{tpu_custom_call.1} parent=1 // pred_region
      _
    $region9: #{tpu_custom_call.1} parent=1 // pred_fallthru
      _
    %p12 = scmp.eq.s32.totalorder 0, 0
    // Predicated region
    $region10: #{tpu_custom_call.1} parent=1 // pred_check
      %p13 = pneg %p12
    $region11: #{tpu_custom_call.1} parent=1 // pred_check_branch
      %15 = sbr.rel (%p13) target = $region13
    $region12: #{tpu_custom_call.1} parent=1 // pred_region
      %16 = vst [vmem:[#allocation2] sm:$0xff] 0.0
      %vm17 = vcmask 7168
      %18 = vst.msk [vmem:[#allocation3] sm:$0xff] %vm17, 0.0
      %19 = vst [vmem:[#allocation4] sm:$0xff] -inf
      %v20 = vld [vmem:[%s0] sm:$0xff]
      %21 = vst [vmem:[#allocation5] sm:$0xff] %v20
    $region13: #{tpu_custom_call.1} parent=1 // pred_fallthru
      _
    %v22 = vld [vmem:[%s0] sm:$0xff]
    %v23 = vld [vmem:[%s0 + $0x8] sm:$0xff]
    %v24 = vld [vmem:[%s0 + $0x10] sm:$0xff]
    %v25 = vld [vmem:[%s0 + $0x18] sm:$0xff]
    %v26 = vld [vmem:[%s0 + $0x20] sm:$0xff]
    %v27 = vld [vmem:[%s0 + $0x28] sm:$0xff]
    %v28 = vld [vmem:[%s0 + $0x30] sm:$0xff]
    %v29 = vld [vmem:[%s0 + $0x38] sm:$0xff]
    %v30 = vld [vmem:[%s0 + $0x40] sm:$0xff]
    %v31 = vld [vmem:[%s0 + $0x48] sm:$0xff]
    %v32 = vld [vmem:[%s0 + $0x50] sm:$0xff]
    %v33 = vld [vmem:[%s0 + $0x58] sm:$0xff]
    %v34 = vld [vmem:[%s0 + $0x60] sm:$0xff]
    %v35 = vld [vmem:[%s0 + $0x68] sm:$0xff]
    %v36 = vld [vmem:[%s0 + $0x70] sm:$0xff]
    %v37 = vld [vmem:[%s0 + $0x78] sm:$0xff]
    %v38 = vld [vmem:[%s1] sm:$0xff]
    %v39 = vld [vmem:[%s1 + $0x8] sm:$0xff]
    %v40 = vld [vmem:[%s1 + $0x10] sm:$0xff]
    %v41 = vld [vmem:[%s1 + $0x18] sm:$0xff]
    %v42 = vld [vmem:[%s1 + $0x20] sm:$0xff]
    %v43 = vld [vmem:[%s1 + $0x28] sm:$0xff]
    %v44 = vld [vmem:[%s1 + $0x30] sm:$0xff]
    %v45 = vld [vmem:[%s1 + $0x38] sm:$0xff]
    %v46 = vld [vmem:[%s1 + $0x40] sm:$0xff]
    %v47 = vld [vmem:[%s1 + $0x48] sm:$0xff]
    %v48 = vld [vmem:[%s1 + $0x50] sm:$0xff]
    %v49 = vld [vmem:[%s1 + $0x58] sm:$0xff]
    %v50 = vld [vmem:[%s1 + $0x60] sm:$0xff]
    %v51 = vld [vmem:[%s1 + $0x68] sm:$0xff]
    %v52 = vld [vmem:[%s1 + $0x70] sm:$0xff]
    %v53 = vld [vmem:[%s1 + $0x78] sm:$0xff]
    %v54 = vld [vmem:[#allocation2] sm:$0xff]
    %56 = vset.pattern.permute.xlu0 0
    %57 = vperm.xlu0 %56, %v38
    %v58 = vpop.permute.xlu0 %57
    %61 = vset.pattern.permute.xlu0 0
    %62 = vperm.xlu0 %61, %v39
    %v63 = vpop.permute.xlu0 %62
    %66 = vset.pattern.permute.xlu0 0
    %67 = vperm.xlu0 %66, %v40
    %v68 = vpop.permute.xlu0 %67
    %71 = vset.pattern.permute.xlu0 0
    %72 = vperm.xlu0 %71, %v41
    %v73 = vpop.permute.xlu0 %72
    %76 = vset.pattern.permute.xlu0 0
    %77 = vperm.xlu0 %76, %v42
    %v78 = vpop.permute.xlu0 %77
    %81 = vset.pattern.permute.xlu0 0
    %82 = vperm.xlu0 %81, %v43
    %v83 = vpop.permute.xlu0 %82
    %86 = vset.pattern.permute.xlu0 0
    %87 = vperm.xlu0 %86, %v44
    %v88 = vpop.permute.xlu0 %87
    %91 = vset.pattern.permute.xlu0 0
    %92 = vperm.xlu0 %91, %v45
    %v93 = vpop.permute.xlu0 %92
    %96 = vset.pattern.permute.xlu0 0
    %97 = vperm.xlu0 %96, %v46
    %v98 = vpop.permute.xlu0 %97
    %101 = vset.pattern.permute.xlu0 0
    %102 = vperm.xlu0 %101, %v47
    %v103 = vpop.permute.xlu0 %102
    %106 = vset.pattern.permute.xlu0 0
    %107 = vperm.xlu0 %106, %v48
    %v108 = vpop.permute.xlu0 %107
    %111 = vset.pattern.permute.xlu0 0
    %112 = vperm.xlu0 %111, %v49
    %v113 = vpop.permute.xlu0 %112
    %116 = vset.pattern.permute.xlu0 0
    %117 = vperm.xlu0 %116, %v50
    %v118 = vpop.permute.xlu0 %117
    %121 = vset.pattern.permute.xlu0 0
    %122 = vperm.xlu0 %121, %v51
    %v123 = vpop.permute.xlu0 %122
    %126 = vset.pattern.permute.xlu0 0
    %127 = vperm.xlu0 %126, %v52
    %v128 = vpop.permute.xlu0 %127
    %131 = vset.pattern.permute.xlu0 0
    %132 = vperm.xlu0 %131, %v53
    %v133 = vpop.permute.xlu0 %132
    %v135 = vmul.f32 %v22, %v58
    %v136 = vmul.f32 %v23, %v63
    %v137 = vmul.f32 %v24, %v68
    %v138 = vmul.f32 %v25, %v73
    %v139 = vmul.f32 %v26, %v78
    %v140 = vmul.f32 %v27, %v83
    %v141 = vmul.f32 %v28, %v88
    %v142 = vmul.f32 %v29, %v93
    %v143 = vmul.f32 %v30, %v98
    %v144 = vmul.f32 %v31, %v103
    %v145 = vmul.f32 %v32, %v108
    %v146 = vmul.f32 %v33, %v113
    %v147 = vmul.f32 %v34, %v118
    %v148 = vmul.f32 %v35, %v123
    %v149 = vmul.f32 %v36, %v128
    %v150 = vmul.f32 %v37, %v133
    %v151 = vadd.f32 %v135, %v136
    %v152 = vadd.f32 %v151, %v137
    %v153 = vadd.f32 %v152, %v138
    %v154 = vadd.f32 %v153, %v139
    %v155 = vadd.f32 %v154, %v140
    %v156 = vadd.f32 %v155, %v141
    %v157 = vadd.f32 %v156, %v142
    %v158 = vadd.f32 %v157, %v143
    %v159 = vadd.f32 %v158, %v144
    %v160 = vadd.f32 %v159, %v145
    %v161 = vadd.f32 %v160, %v146
    %v162 = vadd.f32 %v161, %v147
    %v163 = vadd.f32 %v162, %v148
    %v164 = vadd.f32 %v163, %v149
    %v165 = vadd.f32 %v164, %v150
    %v166 = vadd.f32 %v54, %v165
    %167 = vst [vmem:[#allocation2] sm:$0xff] %v166
    %v168 = vld [vmem:[#allocation3] sm:$0xff]
    %vm169 = vcmask 7168
    %v170 = vsel %vm169, %v38, 0.0
    %v171 = vsel %vm169, %v39, 0.0
    %v172 = vadd.f32 %v170, %v171
    %v173 = vsel %vm169, %v40, 0.0
    %v174 = vadd.f32 %v172, %v173
    %v175 = vsel %vm169, %v41, 0.0
    %v176 = vadd.f32 %v174, %v175
    %v177 = vsel %vm169, %v42, 0.0
    %v178 = vadd.f32 %v176, %v177
    %v179 = vsel %vm169, %v43, 0.0
    %v180 = vadd.f32 %v178, %v179
    %v181 = vsel %vm169, %v44, 0.0
    %v182 = vadd.f32 %v180, %v181
    %v183 = vsel %vm169, %v45, 0.0
    %v184 = vadd.f32 %v182, %v183
    %v185 = vsel %vm169, %v46, 0.0
    %v186 = vadd.f32 %v184, %v185
    %v187 = vsel %vm169, %v47, 0.0
    %v188 = vadd.f32 %v186, %v187
    %v189 = vsel %vm169, %v48, 0.0
    %v190 = vadd.f32 %v188, %v189
    %v191 = vsel %vm169, %v49, 0.0
    %v192 = vadd.f32 %v190, %v191
    %v193 = vsel %vm169, %v50, 0.0
    %v194 = vadd.f32 %v192, %v193
    %v195 = vsel %vm169, %v51, 0.0
    %v196 = vadd.f32 %v194, %v195
    %v197 = vsel %vm169, %v52, 0.0
    %v198 = vadd.f32 %v196, %v197
    %v199 = vsel %vm169, %v53, 0.0
    %v200 = vadd.f32 %v198, %v199
    %v201 = vadd.f32 %v168, %v200
    %202 = vst.msk [vmem:[#allocation3] sm:$0xff] %vm169, %v201
    %vm203 = vcmp.gt.f32.partialorder %v38, 0.0
    %vm204 = vcmp.gt.f32.partialorder %v39, 0.0
    %vm205 = vcmp.gt.f32.partialorder %v40, 0.0
    %vm206 = vcmp.gt.f32.partialorder %v41, 0.0
    %vm207 = vcmp.gt.f32.partialorder %v42, 0.0
    %vm208 = vcmp.gt.f32.partialorder %v43, 0.0
    %vm209 = vcmp.gt.f32.partialorder %v44, 0.0
    %vm210 = vcmp.gt.f32.partialorder %v45, 0.0
    %vm211 = vcmp.gt.f32.partialorder %v46, 0.0
    %vm212 = vcmp.gt.f32.partialorder %v47, 0.0
    %vm213 = vcmp.gt.f32.partialorder %v48, 0.0
    %vm214 = vcmp.gt.f32.partialorder %v49, 0.0
    %vm215 = vcmp.gt.f32.partialorder %v50, 0.0
    %vm216 = vcmp.gt.f32.partialorder %v51, 0.0
    %vm217 = vcmp.gt.f32.partialorder %v52, 0.0
    %vm218 = vcmp.gt.f32.partialorder %v53, 0.0
    %v219 = vsel %vm203, 1, 0
    %v220 = vsel %vm204, 1, 0
    %v221 = vsel %vm205, 1, 0
    %v222 = vsel %vm206, 1, 0
    %v223 = vsel %vm207, 1, 0
    %v224 = vsel %vm208, 1, 0
    %v225 = vsel %vm209, 1, 0
    %v226 = vsel %vm210, 1, 0
    %v227 = vsel %vm211, 1, 0
    %v228 = vsel %vm212, 1, 0
    %v229 = vsel %vm213, 1, 0
    %v230 = vsel %vm214, 1, 0
    %v231 = vsel %vm215, 1, 0
    %v232 = vsel %vm216, 1, 0
    %v233 = vsel %vm217, 1, 0
    %v234 = vsel %vm218, 1, 0
    %235 = vset.pattern.permute.xlu0 0
    %236 = vperm.xlu0 %235, %v219
    %v237 = vpop.permute.xlu0 %236
    %238 = vset.pattern.permute.xlu0 0
    %239 = vperm.xlu0 %238, %v220
    %v240 = vpop.permute.xlu0 %239
    %241 = vset.pattern.permute.xlu0 0
    %242 = vperm.xlu0 %241, %v221
    %v243 = vpop.permute.xlu0 %242
    %244 = vset.pattern.permute.xlu0 0
    %245 = vperm.xlu0 %244, %v222
    %v246 = vpop.permute.xlu0 %245
    %247 = vset.pattern.permute.xlu0 0
    %248 = vperm.xlu0 %247, %v223
    %v249 = vpop.permute.xlu0 %248
    %250 = vset.pattern.permute.xlu0 0
    %251 = vperm.xlu0 %250, %v224
    %v252 = vpop.permute.xlu0 %251
    %253 = vset.pattern.permute.xlu0 0
    %254 = vperm.xlu0 %253, %v225
    %v255 = vpop.permute.xlu0 %254
    %256 = vset.pattern.permute.xlu0 0
    %257 = vperm.xlu0 %256, %v226
    %v258 = vpop.permute.xlu0 %257
    %259 = vset.pattern.permute.xlu0 0
    %260 = vperm.xlu0 %259, %v227
    %v261 = vpop.permute.xlu0 %260
    %262 = vset.pattern.permute.xlu0 0
    %263 = vperm.xlu0 %262, %v228
    %v264 = vpop.permute.xlu0 %263
    %265 = vset.pattern.permute.xlu0 0
    %266 = vperm.xlu0 %265, %v229
    %v267 = vpop.permute.xlu0 %266
    %268 = vset.pattern.permute.xlu0 0
    %269 = vperm.xlu0 %268, %v230
    %v270 = vpop.permute.xlu0 %269
    %271 = vset.pattern.permute.xlu0 0
    %272 = vperm.xlu0 %271, %v231
    %v273 = vpop.permute.xlu0 %272
    %274 = vset.pattern.permute.xlu0 0
    %275 = vperm.xlu0 %274, %v232
    %v276 = vpop.permute.xlu0 %275
    %277 = vset.pattern.permute.xlu0 0
    %278 = vperm.xlu0 %277, %v233
    %v279 = vpop.permute.xlu0 %278
    %280 = vset.pattern.permute.xlu0 0
    %281 = vperm.xlu0 %280, %v234
    %v282 = vpop.permute.xlu0 %281
    %vm283 = vcmp.eq.s32.totalorder %v237, 1
    %vm284 = vcmp.eq.s32.totalorder %v240, 1
    %vm285 = vcmp.eq.s32.totalorder %v243, 1
    %vm286 = vcmp.eq.s32.totalorder %v246, 1
    %vm287 = vcmp.eq.s32.totalorder %v249, 1
    %vm288 = vcmp.eq.s32.totalorder %v252, 1
    %vm289 = vcmp.eq.s32.totalorder %v255, 1
    %vm290 = vcmp.eq.s32.totalorder %v258, 1
    %vm291 = vcmp.eq.s32.totalorder %v261, 1
    %vm292 = vcmp.eq.s32.totalorder %v264, 1
    %vm293 = vcmp.eq.s32.totalorder %v267, 1
    %vm294 = vcmp.eq.s32.totalorder %v270, 1
    %vm295 = vcmp.eq.s32.totalorder %v273, 1
    %vm296 = vcmp.eq.s32.totalorder %v276, 1
    %vm297 = vcmp.eq.s32.totalorder %v279, 1
    %vm298 = vcmp.eq.s32.totalorder %v282, 1
    %v299 = vsel %vm283, %v22, -inf
    %v300 = vsel %vm284, %v23, -inf
    %v301 = vsel %vm285, %v24, -inf
    %v302 = vsel %vm286, %v25, -inf
    %v303 = vsel %vm287, %v26, -inf
    %v304 = vsel %vm288, %v27, -inf
    %v305 = vsel %vm289, %v28, -inf
    %v306 = vsel %vm290, %v29, -inf
    %v307 = vsel %vm291, %v30, -inf
    %v308 = vsel %vm292, %v31, -inf
    %v309 = vsel %vm293, %v32, -inf
    %v310 = vsel %vm294, %v33, -inf
    %v311 = vsel %vm295, %v34, -inf
    %v312 = vsel %vm296, %v35, -inf
    %v313 = vsel %vm297, %v36, -inf
    %v314 = vsel %vm298, %v37, -inf
    %v315 = vld [vmem:[#allocation4] sm:$0xff]
    %v316 = vmax.f32 %v299, %v303
    %v317 = vmax.f32 %v300, %v304
    %v318 = vmax.f32 %v301, %v305
    %v319 = vmax.f32 %v302, %v306
    %v320 = vmax.f32 %v316, %v307
    %v321 = vmax.f32 %v317, %v308
    %v322 = vmax.f32 %v318, %v309
    %v323 = vmax.f32 %v319, %v310
    %v324 = vmax.f32 %v320, %v311
    %v325 = vmax.f32 %v321, %v312
    %v326 = vmax.f32 %v322, %v313
    %v327 = vmax.f32 %v323, %v314
    %v328 = vmax.f32 %v324, %v325
    %v329 = vmax.f32 %v326, %v327
    %v330 = vmax.f32 %v328, %v329
    %v331 = vmax.f32 %v315, %v330
    %332 = vst [vmem:[#allocation4] sm:$0xff] %v331
    // Predicated region
    $region14: #{tpu_custom_call.1} parent=1 // pred_check
      %p333 = pneg %p12
    $region15: #{tpu_custom_call.1} parent=1 // pred_check_branch
      %335 = sbr.rel (%p333) target = $region17
    $region16: #{tpu_custom_call.1} parent=1 // pred_region
      %v336 = vld [vmem:[#allocation2] sm:$0xff]
      %v337 = vld [vmem:[#allocation3] sm:$0xff]
      %339 = vset.pattern.permute.xlu0 0
      %340 = vperm.xlu0 %339, %v337
      %v341 = vpop.permute.xlu0 %340
      %v343 = vrcp.pop %v341
      %v344 = vmul.f32 %v336, %v343
      %345 = vadd.xlane.f32.xlu0 %v344
      %v346 = vpop.xlane.xlu0 %345
      %v347 = vrcp.pop 128.0
      %v348 = vmul.f32 %v346, %v347
      %v349 = vsub.f32 %v344, %v348
      %v350 = vmul.f32 %v349, %v349
      %351 = vadd.xlane.f32.xlu0 %v350
      %v352 = vpop.xlane.xlu0 %351
      %v353 = vmul.f32 %v352, %v347
      %v354 = vadd.f32 %v353, 1e-05
      %v355 = vrsqrt.pop %v354
      %v356 = vmul.f32 %v349, %v355
      %357 = vst [vmem:[#allocation6] sm:$0xff] %v356
      %v358 = vld [vmem:[#allocation5] sm:$0xff]
      %359 = vadd.xlane.f32.xlu0 %v358
      %v360 = vpop.xlane.xlu0 %359
      %v361 = vmul.f32 %v360, %v347
      %v362 = vsub.f32 %v358, %v361
      %v363 = vmul.f32 %v362, %v362
      %364 = vadd.xlane.f32.xlu0 %v363
      %v365 = vpop.xlane.xlu0 %364
      %v366 = vmul.f32 %v365, %v347
      %v367 = vadd.f32 %v366, 1e-05
      %v368 = vrsqrt.pop %v367
      %v369 = vmul.f32 %v362, %v368
      %370 = vst [vmem:[#allocation6 + $0x8] sm:$0xff] %v369
      %v371 = vld [vmem:[#allocation4] sm:$0xff]
      %372 = vadd.xlane.f32.xlu0 %v371
      %v373 = vpop.xlane.xlu0 %372
      %v374 = vmul.f32 %v373, %v347
      %v375 = vsub.f32 %v371, %v374
      %v376 = vmul.f32 %v375, %v375
      %377 = vadd.xlane.f32.xlu0 %v376
      %v378 = vpop.xlane.xlu0 %377
      %v379 = vmul.f32 %v378, %v347
      %v380 = vadd.f32 %v379, 1e-05
      %v381 = vrsqrt.pop %v380
      %v382 = vmul.f32 %v375, %v381
      %383 = vst [vmem:[#allocation6 + $0x10] sm:$0xff] %v382
    $region17: #{tpu_custom_call.1} parent=1 // pred_fallthru
      _
    // Predicated region
    $region18: #{tpu_custom_call.1} parent=1 // pred_check
      _
    $region19: #{tpu_custom_call.1} parent=1 // pred_check_branch
      %385 = sbr.rel (0) target = $region21
    $region20: #{tpu_custom_call.1} parent=1 // pred_region
      %s387 = ssub.s32 384, 384
      %388 = vsyncadd [#allocation7], %s387
      %s390 = sshll.u32 [#allocation6], 4
      %s391 = int_to_ptr.vmem [resolvable:$true] %s390
      %393 = dma.vmem_to_hbm [thread:$0]  %s391, 384, %s2, [#allocation7]
    $region21: #{tpu_custom_call.1} parent=1 // pred_fallthru
      _
    // Predicated region
    $region22: #{tpu_custom_call.1} parent=1 // pred_check
      _
    $region23: #{tpu_custom_call.1} parent=1 // pred_check_branch
      %395 = sbr.rel (0) target = $region25
    $region24: #{tpu_custom_call.1} parent=1 // pred_region
      %396 = dma.done [#allocation7], 384
    $region25: #{tpu_custom_call.1} parent=1 // pred_fallthru
      _
    %397 = vsyncpa [#allocation7], 1

</llo_original>
